<compile_context>
chip_gen: v5e
topology: v5e:2x2
jax: 0.10.0
libtpu: 0.0.40
codegen_flags: <defaults>
</compile_context>

<pallas_src>
import functools
import math

import jax
import jax.numpy as jnp
import numpy as np
from jax import lax
from jax.experimental import pallas as pl
from jax.experimental.pallas import tpu as pltpu

DIM_MODEL = 32


def _round_up(n, m):
    return ((n + m - 1) // m) * m


def pos_encoding_kernel(x_ref, wx_ref, wpos_ref, b_ref, o_ref, *, seq_len, tile_m):
    """Fused PositionalEncoding over one tile of flattened rows.

    x_ref    : (tile_m, D)  activations, batch*seq folded into sublanes
    wx_ref   : (D, D)       pre-transposed weight for the x part (W[:, :D].T)
    wpos_ref : (1, D)       weight column for the position feature (W[:, D])
    b_ref    : (1, D)       bias
    o_ref    : (tile_m, D)  output
    """
    x = x_ref[...]                                                   # (tile_m, D)

    # Single MXU matmul for this row tile (pre-transposed weight, no .T here).
    proj = jnp.dot(x, wx_ref[...], preferred_element_type=jnp.float32)

    # Global row index -> position index (rows are ordered b*S + s, so pos = row % S).
    row0 = pl.program_id(0) * tile_m
    rows = row0 + lax.broadcasted_iota(jnp.int32, (tile_m, 1), 0)    # (tile_m, 1)
    pos = (rows % seq_len).astype(jnp.float32)

    out = proj + pos * wpos_ref[...] + b_ref[...]
    o_ref[...] = jnp.maximum(out, 0.0).astype(o_ref.dtype)           # ReLU


def positional_encoding(x, weight, bias, *, max_tile_m=2048):
    """x: (B, S, D); weight: (D, D+1); bias: (D,). Returns (B, S, D)."""
    B, S, D = x.shape
    assert weight.shape == (D, D + 1) and bias.shape == (D,)

    # One-time parameter prep in the wrapper (free relative to the kernel):
    wx_t = weight[:, :D].T              # (D, D)  contraction on leading axis
    wpos = weight[:, D].reshape(1, D)   # (1, D)
    b = bias.reshape(1, D)              # (1, D)

    # Flatten batch into the sublane axis -> fewer, fatter vector/MXU ops.
    rows = B * S
    x2d = x.reshape(rows, D)

    # Sublane-aligned row tile; pad rows so the grid divides evenly.
    tile_m = min(max_tile_m, _round_up(rows, 8))          # multiple of 8
    rows_p = _round_up(rows, tile_m)
    if rows_p != rows:
        x2d = jnp.pad(x2d, ((0, rows_p - rows), (0, 0)))
    grid = (rows_p // tile_m,)

    out2d = pl.pallas_call(
        functools.partial(pos_encoding_kernel, seq_len=S, tile_m=tile_m),
        out_shape=jax.ShapeDtypeStruct((rows_p, D), x.dtype),
        grid=grid,
        in_specs=[
            pl.BlockSpec((tile_m, D), lambda i: (i, 0)),  # row tile
            pl.BlockSpec((D, D), lambda i: (0, 0)),       # weights resident
            pl.BlockSpec((1, D), lambda i: (0, 0)),
            pl.BlockSpec((1, D), lambda i: (0, 0)),
        ],
        out_specs=pl.BlockSpec((tile_m, D), lambda i: (i, 0)),
        compiler_params=pltpu.CompilerParams(
            dimension_semantics=("parallel",)),
    )(x2d, wx_t, wpos, b)

    return out2d[:rows].reshape(B, S, D)


# ---------------- pure-JAX reference (mirrors the PyTorch forward) ----------------
def positional_encoding_ref(x, weight, bias):
    B, S, D = x.shape
    pos = jnp.arange(S, dtype=x.dtype).reshape(1, S, 1)
    pos = jnp.broadcast_to(pos, (B, S, 1))
    x_pos = jnp.concatenate([x, pos], axis=2)                        # (B, S, D+1)
    return jax.nn.relu(x_pos @ weight.T + bias)


# ---------------- deterministic parameter init (PyTorch Linear default) -----------
def init_params(key, dim_model):
    fan_in = dim_model + 1
    bound = 1.0 / math.sqrt(fan_in)
    kw, kb = jax.random.split(key)
    weight = jax.random.uniform(kw, (dim_model, dim_model + 1), jnp.float32,
                                -bound, bound)
    bias = jax.random.uniform(kb, (dim_model,), jnp.float32, -bound, bound)
    return weight, bias


if __name__ == "__main__":
    key = jax.random.PRNGKey(0)
    B, S, D = 2, 8, DIM_MODEL

    x = jax.random.normal(jax.random.fold_in(key, 123), (B, S, D), jnp.float32)
    weight, bias = init_params(jax.random.fold_in(key, 7), D)

    out = positional_encoding(x, weight, bias)
    out = jax.block_until_ready(out)

    out_ref = positional_encoding_ref(x, weight, bias)
    np.testing.assert_allclose(np.asarray(out), np.asarray(out_ref),
                               rtol=1e-5, atol=1e-5)
    print("KERNEL_OK")
</pallas_src>

<mosaic_0001>
module attributes {stable_mosaic.version = 11 : i64} {
  func.func @pos_encoding_kernel(%arg0: i32, %arg1: memref<16x32xf32, #tpu.memory_space<vmem>>, %arg2: memref<32x32xf32, #tpu.memory_space<vmem>>, %arg3: memref<1x32xf32, #tpu.memory_space<vmem>>, %arg4: memref<1x32xf32, #tpu.memory_space<vmem>>, %arg5: memref<16x32xf32, #tpu.memory_space<vmem>>) attributes {dimension_semantics = [#tpu.dimension_semantics<parallel>], iteration_bounds = array<i64: 1>, scalar_prefetch = 0 : i64, scratch_operands = 0 : i64, tpu.core_type = #tpu.core_type<tc>, window_params = [{transform_indices = @transform_0, window_bounds = array<i64: 16, 32>}, {pipeline_mode = #tpu.pipeline_mode<synchronous>, transform_indices = @transform_1, window_bounds = array<i64: 32, 32>}, {pipeline_mode = #tpu.pipeline_mode<synchronous>, transform_indices = @transform_2, window_bounds = array<i64: 1, 32>}, {pipeline_mode = #tpu.pipeline_mode<synchronous>, transform_indices = @transform_3, window_bounds = array<i64: 1, 32>}, {transform_indices = @transform_4, window_bounds = array<i64: 16, 32>}]} {
    %c0 = arith.constant 0 : index
    %c0_0 = arith.constant 0 : index
    %0 = vector.load %arg1[%c0, %c0_0] : memref<16x32xf32, #tpu.memory_space<vmem>>, vector<16x32xf32>
    %c0_1 = arith.constant 0 : index
    %c0_2 = arith.constant 0 : index
    %1 = vector.load %arg2[%c0_1, %c0_2] : memref<32x32xf32, #tpu.memory_space<vmem>>, vector<32x32xf32>
    %cst = arith.constant dense<0.000000e+00> : vector<16x32xf32>
    %2 = tpu.matmul %0, %1, %cst {dimension_numbers = #tpu.dot_dimension_numbers<[1], [0], [0], [1], [0, 0, 1, 1], [], []>} : vector<16x32xf32>, vector<32x32xf32>, vector<16x32xf32> -> vector<16x32xf32>
    %c16_i32 = arith.constant 16 : i32
    %3 = arith.muli %arg0, %c16_i32 : i32
    %4 = tpu.iota {dimensions = array<i32: 0>} : vector<16x1xi32>
    %5 = vector.broadcast %3 : i32 to vector<16x1xi32>
    %6 = arith.addi %5, %4 : vector<16x1xi32>
    %c8_i32 = arith.constant 8 : i32
    %c0_i32 = arith.constant 0 : i32
    %7 = arith.cmpi eq, %c8_i32, %c0_i32 : i32
    %c1_i32 = arith.constant 1 : i32
    %8 = arith.select %7, %c1_i32, %c8_i32 : i32
    %9 = vector.broadcast %8 : i32 to vector<16x1xi32>
    %10 = arith.remsi %6, %9 : vector<16x1xi32>
    %c0_i32_3 = arith.constant 0 : i32
    %11 = vector.broadcast %c0_i32_3 : i32 to vector<16x1xi32>
    %12 = arith.cmpi ne, %10, %11 : vector<16x1xi32>
    %c0_i32_4 = arith.constant 0 : i32
    %13 = vector.broadcast %c0_i32_4 : i32 to vector<16x1xi32>
    %14 = arith.cmpi slt, %10, %13 : vector<16x1xi32>
    %c0_i32_5 = arith.constant 0 : i32
    %15 = arith.cmpi slt, %8, %c0_i32_5 : i32
    %16 = vector.broadcast %15 : i1 to vector<16x1xi1>
    %17 = vector.broadcast %16 : vector<16x1xi1> to vector<16x1xi1>
    %18 = arith.xori %14, %17 : vector<16x1xi1>
    %19 = arith.andi %18, %12 : vector<16x1xi1>
    %20 = vector.broadcast %8 : i32 to vector<16x1xi32>
    %21 = arith.addi %10, %20 : vector<16x1xi32>
    %22 = arith.select %19, %21, %10 : vector<16x1xi1>, vector<16x1xi32>
    %23 = arith.sitofp %22 : vector<16x1xi32> to vector<16x1xf32>
    %c0_6 = arith.constant 0 : index
    %c0_7 = arith.constant 0 : index
    %24 = vector.load %arg3[%c0_6, %c0_7] : memref<1x32xf32, #tpu.memory_space<vmem>>, vector<1x32xf32>
    %25 = vector.broadcast %23 : vector<16x1xf32> to vector<16x32xf32>
    %26 = vector.broadcast %24 : vector<1x32xf32> to vector<16x32xf32>
    %27 = arith.mulf %25, %26 : vector<16x32xf32>
    %28 = arith.addf %2, %27 : vector<16x32xf32>
    %c0_8 = arith.constant 0 : index
    %c0_9 = arith.constant 0 : index
    %29 = vector.load %arg4[%c0_8, %c0_9] : memref<1x32xf32, #tpu.memory_space<vmem>>, vector<1x32xf32>
    %30 = vector.broadcast %29 : vector<1x32xf32> to vector<16x32xf32>
    %31 = arith.addf %28, %30 : vector<16x32xf32>
    %cst_10 = arith.constant 0.000000e+00 : f32
    %32 = vector.broadcast %cst_10 : f32 to vector<16x32xf32>
    %33 = arith.maximumf %31, %32 : vector<16x32xf32>
    %c0_11 = arith.constant 0 : index
    %c0_12 = arith.constant 0 : index
    %34 = vector.load %arg5[%c0_11, %c0_12] : memref<16x32xf32, #tpu.memory_space<vmem>>, vector<16x32xf32>
    tpu.vector_store %arg5[%c0_11, %c0_12], %33 {strides = array<i32>} : memref<16x32xf32, #tpu.memory_space<vmem>>, vector<16x32xf32>,
    return
  }
  func.func @transform_0(%arg0: i32) -> (i32, i32) {
    %c0_i32 = arith.constant 0 : i32
    %c0_i32_0 = arith.constant 0 : i32
    return %arg0, %c0_i32 : i32, i32
  }
  func.func @transform_1(%arg0: i32) -> (i32, i32) {
    %c0_i32 = arith.constant 0 : i32
    %c0_i32_0 = arith.constant 0 : i32
    %c0_i32_1 = arith.constant 0 : i32
    return %c0_i32, %c0_i32_0 : i32, i32
  }
  func.func @transform_2(%arg0: i32) -> (i32, i32) {
    %c0_i32 = arith.constant 0 : i32
    %c0_i32_0 = arith.constant 0 : i32
    %c0_i32_1 = arith.constant 0 : i32
    return %c0_i32, %c0_i32_0 : i32, i32
  }
  func.func @transform_3(%arg0: i32) -> (i32, i32) {
    %c0_i32 = arith.constant 0 : i32
    %c0_i32_0 = arith.constant 0 : i32
    %c0_i32_1 = arith.constant 0 : i32
    return %c0_i32, %c0_i32_0 : i32, i32
  }
  func.func @transform_4(%arg0: i32) -> (i32, i32) {
    %c0_i32 = arith.constant 0 : i32
    %c0_i32_0 = arith.constant 0 : i32
    return %arg0, %c0_i32 : i32, i32
  }
}

</mosaic_0001>

<llo_original>
// kernel: tpu_custom_call.1
$region0: #{tpu_custom_call.1}
  #allocation0 [shape = 'u32[]', space=smem, size = 0x4, offset = 0x4, fixed_abs, tag = 'smem constant byte address 0x4 - core index']
  #allocation1 [shape = 'u32[72,128]{1,0:T(1,128)}', space=vmem, size = 0x9000, scoped, tag = 'internal scratch']
  %s0 = inlined_call_operand.hbm [shape: f32[16,32], index: 0, kind: input, shape index: {}]
  %s1 = inlined_call_operand.hbm [shape: f32[32,32], index: 1, kind: input, shape index: {}]
  %s2 = inlined_call_operand.vmem [shape: f32[1,32], index: 2, kind: input, shape index: {}]
  %s3 = inlined_call_operand.vmem [shape: f32[1,32], index: 3, kind: input, shape index: {}]
  %s4 = inlined_call_operand.hbm [shape: f32[16,32], index: 4, kind: output, shape index: {}]
  %s5 = sld [smem:[#allocation0]]
  $region34: #{tpu_custom_call.1} parent=0
    _
  %s7 = ssub.s32 1, %s5
  %s8 = scalar_select 0, %s7, %s5
  $region1: #{tpu_custom_call.1} parent=0
    #allocation2 [shape = 'u8[8192]{0}', space=vmem, size = 0x2000, scoped, tag = 'input window, operand 0, single buffered']
    #allocation3 [shape = 's32[1]{0}', space=sflag, size = 0x4, scoped, tag = 'scoped memory for tpu_custom_call.1']
    #allocation4 [shape = 's32[1]{0}', space=sflag, size = 0x4, scoped, tag = 'scoped memory for tpu_custom_call.1']
    #allocation5 [shape = 'u8[16384]{0}', space=vmem, size = 0x4000, scoped, tag = 'input window, operand 1, single buffered']
    #allocation6 [shape = 's32[1]{0}', space=sflag, size = 0x4, scoped, tag = 'scoped memory for tpu_custom_call.1']
    #allocation7 [shape = 'u8[8192]{0}', space=vmem, size = 0x2000, scoped, tag = 'output window, operand 0, single buffered']
    %9 = vsyncpa [#allocation3], 0
    %10 = vsyncpa [#allocation6], 0
    %11 = vsyncpa [#allocation4], 0
    // Predicated region
    $region2: #{tpu_custom_call.1} parent=1 // pred_check
      _
    $region3: #{tpu_custom_call.1} parent=1 // pred_check_branch
      %13 = sbr.rel (0) target = $region5
    $region4: #{tpu_custom_call.1} parent=1 // pred_region
      %15 = vsyncadd [#allocation3], 0
      %s16 = sshll.u32 %s0, 4
      %s17 = int_to_ptr.hbm [resolvable:$true] %s16
      %s18 = sshll.u32 [#allocation2], 4
      %s19 = int_to_ptr.vmem [resolvable:$true] %s18
      %24 = dma.hbm_to_vmem [thread:$0]  %s17, 256, %s19, [#allocation3], 128, 128, 8
    $region5: #{tpu_custom_call.1} parent=1 // pred_fallthru
      _
    // Predicated region
    $region6: #{tpu_custom_call.1} parent=1 // pred_check
      _
    $region7: #{tpu_custom_call.1} parent=1 // pred_check_branch
      %26 = sbr.rel (0) target = $region9
    $region8: #{tpu_custom_call.1} parent=1 // pred_region
      %28 = vsyncadd [#allocation6], 0
      %s29 = sshll.u32 %s1, 4
      %s30 = int_to_ptr.hbm [resolvable:$true] %s29
      %s31 = sshll.u32 [#allocation5], 4
      %s32 = int_to_ptr.vmem [resolvable:$true] %s31
      %37 = dma.hbm_to_vmem [thread:$0]  %s30, 512, %s32, [#allocation6], 128, 128, 8
    $region9: #{tpu_custom_call.1} parent=1 // pred_fallthru
      _
    // Predicated region
    $region10: #{tpu_custom_call.1} parent=1 // pred_check
      _
    $region11: #{tpu_custom_call.1} parent=1 // pred_check_branch
      %39 = sbr.rel (0) target = $region13
    $region12: #{tpu_custom_call.1} parent=1 // pred_region
      _
    $region13: #{tpu_custom_call.1} parent=1 // pred_fallthru
      _
    // Predicated region
    $region14: #{tpu_custom_call.1} parent=1 // pred_check
      _
    $region15: #{tpu_custom_call.1} parent=1 // pred_check_branch
      %41 = sbr.rel (0) target = $region17
    $region16: #{tpu_custom_call.1} parent=1 // pred_region
      _
    $region17: #{tpu_custom_call.1} parent=1 // pred_fallthru
      _
    // Predicated region
    $region18: #{tpu_custom_call.1} parent=1 // pred_check
      _
    $region19: #{tpu_custom_call.1} parent=1 // pred_check_branch
      %43 = sbr.rel (0) target = $region21
    $region20: #{tpu_custom_call.1} parent=1 // pred_region
      %45 = dma.done [#allocation3], 256
    $region21: #{tpu_custom_call.1} parent=1 // pred_fallthru
      _
    // Predicated region
    $region22: #{tpu_custom_call.1} parent=1 // pred_check
      _
    $region23: #{tpu_custom_call.1} parent=1 // pred_check_branch
      %47 = sbr.rel (0) target = $region25
    $region24: #{tpu_custom_call.1} parent=1 // pred_region
      %49 = dma.done [#allocation6], 512
    $region25: #{tpu_custom_call.1} parent=1 // pred_fallthru
      _
    %v50 = vld [vmem:[#allocation2] sm:$0xff]
    %v51 = vld [vmem:[#allocation2 + $0x8] sm:$0xff]
    %v52 = vld [vmem:[#allocation5] sm:$0xff]
    %v53 = vld [vmem:[#allocation5 + $0x8] sm:$0xff]
    %v54 = vld [vmem:[#allocation5 + $0x10] sm:$0xff]
    %v55 = vld [vmem:[#allocation5 + $0x18] sm:$0xff]
    %s56 = smul.u32 0, 16
    %v57 = vlaneseq
    %v58 = vshrl.u32 %v57, 7
    %v59 = vadd.s32 %v58, 8
    %v60 = vstv %s56
    %v61 = vadd.s32 %v60, %v58
    %v62 = vadd.s32 %v60, %v59
    %vm63 = vcmp.lt.s32.totalorder %v61, 0
    %v64 = vsub.s32 0, %v61
    %v65 = vsel %vm63, %v64, %v61
    %v66 = vshrl.u32 %v65, 3
    %v67 = vand.u32 %v65, 7
    %v68 = vsub.s32 0, %v67
    %v69 = vsel %vm63, %v68, %v67
    %vm70 = vcmp.lt.s32.totalorder %v62, 0
    %v71 = vsub.s32 0, %v62
    %v72 = vsel %vm70, %v71, %v62
    %v73 = vshrl.u32 %v72, 3
    %v74 = vand.u32 %v72, 7
    %v75 = vsub.s32 0, %v74
    %v76 = vsel %vm70, %v75, %v74
    %vm77 = vcmp.ne.s32.totalorder %v69, 0
    %vm78 = vcmp.ne.s32.totalorder %v76, 0
    %vm79 = vcmp.lt.s32.totalorder %v69, 0
    %vm80 = vcmp.lt.s32.totalorder %v76, 0
    %vm81 = vmand %vm79, %vm77
    %vm82 = vmand %vm80, %vm78
    %v83 = vadd.s32 %v69, 8
    %v84 = vadd.s32 %v76, 8
    %v85 = vsel %vm81, %v83, %v69
    %v86 = vsel %vm82, %v84, %v76
    %v87 = vcvt.s32.f32 %v85
    %v88 = vcvt.s32.f32 %v86
    %v89 = vld [vmem:[%s2] sm:$0x1]
    %v91 = vperm.slane %v89, 0
    %v93 = vmul.f32 %v87, %v91
    %v94 = vmul.f32 %v88, %v91
    %vm95 = vcmask 261120
    %v97 = vsel %vm95, %v50, 0
    %v100 = vsel %vm95, %v51, 0
    %102 = vmatpush.msra.mxu0 0.0
    %103 = vmatpush.msra.mxu0 0.0
    %104 = vmatpush.msra.mxu0 0.0
    %105 = vmatpush.msra.mxu0 0.0
    %106 = vmatpush.msra.mxu0 0.0
    %107 = vmatpush.msra.mxu0 0.0
    %108 = vmatpush.msra.mxu0 0.0
    %109 = vmatpush.msra.mxu0 0.0
    %110 = vmatpush.msra.mxu0 0.0
    %111 = vmatpush.msra.mxu0 0.0
    %112 = vmatpush.msra.mxu0 0.0
    %113 = vmatpush.msra.mxu0 0.0
    %114 = vmatpush.msra.mxu0 %v55
    %115 = vmatpush.msra.mxu0 %v54
    %116 = vmatpush.msra.mxu0 %v53
    %117 = vmatpush.msra.mxu0 %v52
    %118 = vmatmul.f32.gmra.mxu0 %v97
    %v119 = vpop.f32.mrf.mxu0
    %v120 = vadd.f32 %v93, %v119
    %121 = vmatmul.f32.gmra.mxu0 %v100
    %v122 = vpop.f32.mrf.mxu0
    %v123 = vadd.f32 %v94, %v122
    %124 = vdwg.mxu0
    %v125 = vld [vmem:[%s3] sm:$0x1]
    %v127 = vperm.slane %v125, 0
    %v129 = vadd.f32 %v120, %v127
    %v130 = vadd.f32 %v123, %v127
    %v131 = vmax.f32 %v129, 0.0
    %v132 = vmax.f32 %v130, 0.0
    %133 = vst.msk [vmem:[#allocation7] sm:$0xff] %vm95, %v131
    %134 = vst.msk [vmem:[#allocation7 + $0x8] sm:$0xff] %vm95, %v132
    // Predicated region
    $region26: #{tpu_custom_call.1} parent=1 // pred_check
      _
    $region27: #{tpu_custom_call.1} parent=1 // pred_check_branch
      %136 = sbr.rel (0) target = $region29
    $region28: #{tpu_custom_call.1} parent=1 // pred_region
      %138 = vsyncadd [#allocation4], 0
      %s139 = sshll.u32 [#allocation7], 4
      %s140 = int_to_ptr.vmem [resolvable:$true] %s139
      %s141 = sshll.u32 %s4, 4
      %s142 = int_to_ptr.hbm [resolvable:$true] %s141
      %147 = dma.vmem_to_hbm [thread:$0]  %s140, 256, %s142, [#allocation4], 128, 128, 8
    $region29: #{tpu_custom_call.1} parent=1 // pred_fallthru
      _
    // Predicated region
    $region30: #{tpu_custom_call.1} parent=1 // pred_check
      _
    $region31: #{tpu_custom_call.1} parent=1 // pred_check_branch
      %149 = sbr.rel (0) target = $region33
    $region32: #{tpu_custom_call.1} parent=1 // pred_region
      %151 = dma.done [#allocation4], 256
    $region33: #{tpu_custom_call.1} parent=1 // pred_fallthru
      _
    %152 = vsyncpa [#allocation3], 1
    %153 = vsyncpa [#allocation6], 1
    %154 = vsyncpa [#allocation4], 1

</llo_original>
